<compile_context>
chip_gen: v5e
topology: v5e:2x2
jax: 0.10.0
libtpu: 0.0.40
codegen_flags: <defaults>
</compile_context>

<pallas_src>
import functools
import math

import jax
import jax.numpy as jnp
from jax.experimental import pallas as pl
from jax.experimental.pallas import tpu as pltpu

LANE = 128
SUBLANE = 8


def _cdiv(a, b):
    return -(-a // b)


def _round_up(a, b):
    return _cdiv(a, b) * b


def _round_down(a, b):
    return (a // b) * b


def _elem_terms(pred, gt):
    """Per-element (loss_term, pos_indicator) matching PyTorch _neg_loss.

    loss_term = log(pred)   * (1-pred)^2           where gt == 1
              = log(1-pred) * pred^2 * (1-gt)^4    where gt <  1
              = 0                                  where gt >  1
    The gt > 1 case matches the reference because (1 - gt) is clamped to 0.
    """
    pred = pred.astype(jnp.float32)
    gt = gt.astype(jnp.float32)
    pos = gt == 1.0
    one_m_pred = 1.0 - pred
    one_m_gt = jnp.maximum(1.0 - gt, 0.0)     # folds away the `gt < 1` guard
    sq = one_m_gt * one_m_gt
    neg_w = sq * sq
    x = jnp.where(pos, pred, one_m_pred)       # single log() per element
    coef = jnp.where(pos, one_m_pred * one_m_pred, pred * pred * neg_w)
    return jnp.log(x) * coef, pos.astype(jnp.float32)


def _focal_loss_kernel(pred_ref, gt_ref, loss_ref, pos_ref, *,
                       block_rows, rows, needs_mask):
    i = pl.program_id(0)

    @pl.when(i == 0)
    def _init():
        loss_ref[...] = jnp.zeros_like(loss_ref)
        pos_ref[...] = jnp.zeros_like(pos_ref)

    pred = pred_ref[...].astype(jnp.float32)
    gt = gt_ref[...].astype(jnp.float32)

    pos = gt == 1.0
    one_m_pred = 1.0 - pred
    one_m_gt = jnp.maximum(1.0 - gt, 0.0)
    sq = one_m_gt * one_m_gt
    neg_w = sq * sq
    x = jnp.where(pos, pred, one_m_pred)
    coef = jnp.where(pos, one_m_pred * one_m_pred, pred * pred * neg_w)
    pos_f = pos.astype(jnp.float32)

    if needs_mask:
        # Only the ragged tail of the last block is logically invalid; its
        # VMEM contents are unspecified (Pallas partial-block read).  Mask at
        # row granularity with one iota.  jnp.where (XLA select) does not
        # propagate NaN/Inf from the unselected branch, and x is forced to 1.0
        # so log() stays finite on garbage rows.
        row = jax.lax.broadcasted_iota(jnp.int32, pred.shape, 0)
        valid = (i * block_rows + row) < rows
        x = jnp.where(valid, x, 1.0)
        coef = jnp.where(valid, coef, 0.0)
        pos_f = jnp.where(valid, pos_f, 0.0)

    loss_elem = jnp.log(x) * coef

    # Tile-aligned reshape (block_rows, 128) -> (block_rows//8, 8, 128) and a
    # leading-axis sum: a pure-VALU add tree into one vreg.  The output refs
    # (constant index_map => resident in VMEM across the grid) are the (8,128)
    # accumulators; cross-lane reduction happens once in plain JAX afterwards.
    loss_ref[...] += loss_elem.reshape(-1, SUBLANE, LANE).sum(axis=0)
    pos_ref[...] += pos_f.reshape(-1, SUBLANE, LANE).sum(axis=0)


@functools.partial(jax.jit, static_argnames=("block_rows_max",))
def focal_loss(pred, gt, *, block_rows_max=2048):
    """Reproduces FocalLoss.forward(out, target) from CornerNet.

    pred, gt: same-shape float arrays (pred expected in (0, 1)).
    Returns a float32 scalar loss.
    """
    assert pred.shape == gt.shape
    n = math.prod(pred.shape)

    pred_flat = pred.reshape(-1)   # free bitcast; no dtype upcast (bf16 OK)
    gt_flat = gt.reshape(-1)

    rows = n // LANE
    n_main = rows * LANE

    total_loss = jnp.zeros((), jnp.float32)
    num_pos = jnp.zeros((), jnp.float32)
    tail_start = 0

    if rows >= SUBLANE:
        if n_main == n:
            pred2d = pred_flat.reshape(rows, LANE)          # pure bitcast
            gt2d = gt_flat.reshape(rows, LANE)
        else:
            # Contiguous prefix (no full-tensor pad copy); the <128-element
            # tail is handled by the pure-JAX epilogue below.
            pred2d = pred_flat[:n_main].reshape(rows, LANE)
            gt2d = gt_flat[:n_main].reshape(rows, LANE)

        brm = max(SUBLANE, _round_down(block_rows_max, SUBLANE))
        nb = _cdiv(rows, brm)
        # Multiple of 8, <= rows, and exactly covering `rows` whenever possible
        # so the no-mask fast path is the common case.
        block_rows = min(_round_up(_cdiv(rows, nb), SUBLANE),
                         _round_down(rows, SUBLANE))
        num_blocks = _cdiv(rows, block_rows)
        needs_mask = (num_blocks * block_rows) != rows

        kernel = functools.partial(
            _focal_loss_kernel,
            block_rows=block_rows,
            rows=rows,
            needs_mask=needs_mask,
        )

        loss_part, pos_part = pl.pallas_call(
            kernel,
            out_shape=(
                jax.ShapeDtypeStruct((SUBLANE, LANE), jnp.float32),
                jax.ShapeDtypeStruct((SUBLANE, LANE), jnp.float32),
            ),
            grid_spec=pltpu.PrefetchScalarGridSpec(
                num_scalar_prefetch=0,
                grid=(num_blocks,),
                in_specs=[
                    pl.BlockSpec((block_rows, LANE), lambda i: (i, 0)),
                    pl.BlockSpec((block_rows, LANE), lambda i: (i, 0)),
                ],
                out_specs=(
                    pl.BlockSpec((SUBLANE, LANE), lambda i: (0, 0)),
                    pl.BlockSpec((SUBLANE, LANE), lambda i: (0, 0)),
                ),
            ),
            compiler_params=pltpu.CompilerParams(
                dimension_semantics=("arbitrary",)),
        )(pred2d, gt2d)

        total_loss = total_loss + jnp.sum(loss_part)
        num_pos = num_pos + jnp.sum(pos_part)
        tail_start = n_main

    if tail_start < n:
        # Tiny epilogue: the <128-element lane tail (or the whole input when it
        # has fewer than 8*128 elements) in plain JAX.
        t_loss, t_pos = _elem_terms(pred_flat[tail_start:], gt_flat[tail_start:])
        total_loss = total_loss + jnp.sum(t_loss)
        num_pos = num_pos + jnp.sum(t_pos)

    # When num_pos == 0 the pos contribution is exactly 0, so the PyTorch
    # `if num_pos == 0` branch collapses to the same formula.
    return -total_loss / jnp.maximum(num_pos, 1.0)


def _focal_loss_ref(pred, gt):
    """Pure-JAX reference matching the PyTorch _neg_loss semantics."""
    pred = pred.astype(jnp.float32)
    gt = gt.astype(jnp.float32)
    pos_inds = (gt == 1.0).astype(jnp.float32)
    neg_inds = (gt < 1.0).astype(jnp.float32)
    neg_weights = (1.0 - gt) ** 4
    pos_loss = jnp.log(pred) * (1.0 - pred) ** 2 * pos_inds
    neg_loss = jnp.log(1.0 - pred) * pred ** 2 * neg_weights * neg_inds
    num_pos = pos_inds.sum()
    pos_loss = pos_loss.sum()
    neg_loss = neg_loss.sum()
    return jnp.where(num_pos == 0.0,
                     -neg_loss,
                     -(pos_loss + neg_loss) / jnp.maximum(num_pos, 1.0))


def _make_inputs(key, shape):
    k_pred, k_gt, k_peak = jax.random.split(key, 3)
    pred = jax.nn.sigmoid(jax.random.normal(k_pred, shape, jnp.float32))
    gt = jax.random.uniform(k_gt, shape, jnp.float32, 0.0, 0.99)
    gt = jnp.where(jax.random.bernoulli(k_peak, 0.02, shape), 1.0, gt)
    return pred, gt


if __name__ == "__main__":
    key = jax.random.PRNGKey(0)
    k1, k2, k3 = jax.random.split(key, 3)

    # Primary small example: NCHW as in the PyTorch module docstring.
    # n = 2048 -> rows = 16, single block, no mask, no tail (fast path).
    B, C, H, W = 2, 4, 16, 16
    pred, gt = _make_inputs(k1, (B, C, H, W))
    loss = jax.block_until_ready(focal_loss(pred, gt))
    ref = _focal_loss_ref(pred, gt)
    assert jnp.allclose(loss, ref, rtol=1e-5, atol=1e-5), (loss, ref)

    # Multi-block with a ragged last block (rows=72, block_rows=16 -> mask on).
    pred2, gt2 = _make_inputs(k2, (2, 4, 32, 36))
    loss2 = jax.block_until_ready(focal_loss(pred2, gt2, block_rows_max=16))
    ref2 = _focal_loss_ref(pred2, gt2)
    assert jnp.allclose(loss2, ref2, rtol=1e-5, atol=1e-5), (loss2, ref2)

    # Non-128-aligned element count: exercises the prefix + lane-tail epilogue
    # and the in-kernel ragged-row mask (n=2584 -> rows=20, tail=24).
    pred3, gt3 = _make_inputs(k3, (2, 4, 17, 19))
    loss3 = jax.block_until_ready(focal_loss(pred3, gt3))
    ref3 = _focal_loss_ref(pred3, gt3)
    assert jnp.allclose(loss3, ref3, rtol=1e-5, atol=1e-5), (loss3, ref3)

    print("KERNEL_OK")
</pallas_src>

<mosaic_0001>
module attributes {stable_mosaic.version = 11 : i64} {
  func.func @_focal_loss_kernel(%arg0: i32, %arg1: memref<16x128xf32, #tpu.memory_space<vmem>>, %arg2: memref<16x128xf32, #tpu.memory_space<vmem>>, %arg3: memref<8x128xf32, #tpu.memory_space<vmem>>, %arg4: memref<8x128xf32, #tpu.memory_space<vmem>>) attributes {dimension_semantics = [#tpu.dimension_semantics<arbitrary>], iteration_bounds = array<i64: 1>, scalar_prefetch = 0 : i64, scratch_operands = 0 : i64, tpu.core_type = #tpu.core_type<tc>, window_params = [{transform_indices = @transform_0, window_bounds = array<i64: 16, 128>}, {transform_indices = @transform_1, window_bounds = array<i64: 16, 128>}, {pipeline_mode = #tpu.pipeline_mode<synchronous>, transform_indices = @transform_2, window_bounds = array<i64: 8, 128>}, {pipeline_mode = #tpu.pipeline_mode<synchronous>, transform_indices = @transform_3, window_bounds = array<i64: 8, 128>}]} {
    %c0_i32 = arith.constant 0 : i32
    %0 = arith.cmpi eq, %arg0, %c0_i32 : i32
    %1 = arith.extui %0 : i1 to i32
    %c0_i32_0 = arith.constant 0 : i32
    %2 = arith.cmpi ne, %1, %c0_i32_0 : i32
    scf.if %2 {
      %cst_17 = arith.constant 0.000000e+00 : f32
      %34 = vector.broadcast %cst_17 : f32 to vector<8x128xf32>
      %c0_18 = arith.constant 0 : index
      %c0_19 = arith.constant 0 : index
      %35 = vector.load %arg3[%c0_18, %c0_19] : memref<8x128xf32, #tpu.memory_space<vmem>>, vector<8x128xf32>
      tpu.vector_store %arg3[%c0_18, %c0_19], %34 {strides = array<i32>} : memref<8x128xf32, #tpu.memory_space<vmem>>, vector<8x128xf32>,
      %cst_20 = arith.constant 0.000000e+00 : f32
      %36 = vector.broadcast %cst_20 : f32 to vector<8x128xf32>
      %c0_21 = arith.constant 0 : index
      %c0_22 = arith.constant 0 : index
      %37 = vector.load %arg4[%c0_21, %c0_22] : memref<8x128xf32, #tpu.memory_space<vmem>>, vector<8x128xf32>
      tpu.vector_store %arg4[%c0_21, %c0_22], %36 {strides = array<i32>} : memref<8x128xf32, #tpu.memory_space<vmem>>, vector<8x128xf32>,
    } else {
    }
    %c0 = arith.constant 0 : index
    %c0_1 = arith.constant 0 : index
    %3 = vector.load %arg1[%c0, %c0_1] : memref<16x128xf32, #tpu.memory_space<vmem>>, vector<16x128xf32>
    %c0_2 = arith.constant 0 : index
    %c0_3 = arith.constant 0 : index
    %4 = vector.load %arg2[%c0_2, %c0_3] : memref<16x128xf32, #tpu.memory_space<vmem>>, vector<16x128xf32>
    %cst = arith.constant 1.000000e+00 : f32
    %5 = vector.broadcast %cst : f32 to vector<16x128xf32>
    %6 = arith.cmpf oeq, %4, %5 : vector<16x128xf32>
    %cst_4 = arith.constant 1.000000e+00 : f32
    %7 = vector.broadcast %cst_4 : f32 to vector<16x128xf32>
    %8 = arith.subf %7, %3 : vector<16x128xf32>
    %cst_5 = arith.constant 1.000000e+00 : f32
    %9 = vector.broadcast %cst_5 : f32 to vector<16x128xf32>
    %10 = arith.subf %9, %4 : vector<16x128xf32>
    %cst_6 = arith.constant 0.000000e+00 : f32
    %11 = vector.broadcast %cst_6 : f32 to vector<16x128xf32>
    %12 = arith.maximumf %10, %11 : vector<16x128xf32>
    %13 = arith.mulf %12, %12 : vector<16x128xf32>
    %14 = arith.mulf %13, %13 : vector<16x128xf32>
    %15 = arith.select %6, %3, %8 : vector<16x128xi1>, vector<16x128xf32>
    %16 = arith.mulf %8, %8 : vector<16x128xf32>
    %17 = arith.mulf %3, %3 : vector<16x128xf32>
    %18 = arith.mulf %17, %14 : vector<16x128xf32>
    %19 = arith.select %6, %16, %18 : vector<16x128xi1>, vector<16x128xf32>
    %20 = arith.extui %6 : vector<16x128xi1> to vector<16x128xi32>
    %21 = arith.sitofp %20 : vector<16x128xi32> to vector<16x128xf32>
    %22 = math.log %15 : vector<16x128xf32>
    %23 = arith.mulf %22, %19 : vector<16x128xf32>
    %c0_7 = arith.constant 0 : index
    %c0_8 = arith.constant 0 : index
    %24 = vector.load %arg3[%c0_7, %c0_8] : memref<8x128xf32, #tpu.memory_space<vmem>>, vector<8x128xf32>
    %25 = vector.shape_cast %23 : vector<16x128xf32> to vector<2x8x128xf32>
    %cst_9 = arith.constant dense<0.000000e+00> : vector<8x128xf32>
    %26 = vector.multi_reduction <add>, %25, %cst_9 [0] : vector<2x8x128xf32> to vector<8x128xf32>
    %27 = arith.addf %24, %26 : vector<8x128xf32>
    %c0_10 = arith.constant 0 : index
    %c0_11 = arith.constant 0 : index
    %28 = vector.load %arg3[%c0_10, %c0_11] : memref<8x128xf32, #tpu.memory_space<vmem>>, vector<8x128xf32>
    tpu.vector_store %arg3[%c0_10, %c0_11], %27 {strides = array<i32>} : memref<8x128xf32, #tpu.memory_space<vmem>>, vector<8x128xf32>,
    %c0_12 = arith.constant 0 : index
    %c0_13 = arith.constant 0 : index
    %29 = vector.load %arg4[%c0_12, %c0_13] : memref<8x128xf32, #tpu.memory_space<vmem>>, vector<8x128xf32>
    %30 = vector.shape_cast %21 : vector<16x128xf32> to vector<2x8x128xf32>
    %cst_14 = arith.constant dense<0.000000e+00> : vector<8x128xf32>
    %31 = vector.multi_reduction <add>, %30, %cst_14 [0] : vector<2x8x128xf32> to vector<8x128xf32>
    %32 = arith.addf %29, %31 : vector<8x128xf32>
    %c0_15 = arith.constant 0 : index
    %c0_16 = arith.constant 0 : index
    %33 = vector.load %arg4[%c0_15, %c0_16] : memref<8x128xf32, #tpu.memory_space<vmem>>, vector<8x128xf32>
    tpu.vector_store %arg4[%c0_15, %c0_16], %32 {strides = array<i32>} : memref<8x128xf32, #tpu.memory_space<vmem>>, vector<8x128xf32>,
    return
  }
  func.func @transform_0(%arg0: i32) -> (i32, i32) {
    %c0_i32 = arith.constant 0 : i32
    %c0_i32_0 = arith.constant 0 : i32
    return %arg0, %c0_i32 : i32, i32
  }
  func.func @transform_1(%arg0: i32) -> (i32, i32) {
    %c0_i32 = arith.constant 0 : i32
    %c0_i32_0 = arith.constant 0 : i32
    return %arg0, %c0_i32 : i32, i32
  }
  func.func @transform_2(%arg0: i32) -> (i32, i32) {
    %c0_i32 = arith.constant 0 : i32
    %c0_i32_0 = arith.constant 0 : i32
    %c0_i32_1 = arith.constant 0 : i32
    return %c0_i32, %c0_i32_0 : i32, i32
  }
  func.func @transform_3(%arg0: i32) -> (i32, i32) {
    %c0_i32 = arith.constant 0 : i32
    %c0_i32_0 = arith.constant 0 : i32
    %c0_i32_1 = arith.constant 0 : i32
    return %c0_i32, %c0_i32_0 : i32, i32
  }
}

</mosaic_0001>

<llo_original>
// kernel: focal_loss.1
$region0: #{focal_loss.1}
  #allocation0 [shape = 'u32[]', space=smem, size = 0x4, offset = 0x4, fixed_abs, tag = 'smem constant byte address 0x4 - core index']
  #allocation1 [shape = 'u32[72,128]{1,0:T(1,128)}', space=vmem, size = 0x9000, scoped, tag = 'internal scratch']
  %s0 = inlined_call_operand.vmem [shape: f32[16,128], index: 0, kind: input, shape index: {}]
  %s1 = inlined_call_operand.vmem [shape: f32[16,128], index: 1, kind: input, shape index: {}]
  %s2 = inlined_call_operand.vmem [shape: f32[8,128], index: 2, kind: output, shape index: {0}]
  %s3 = inlined_call_operand.vmem [shape: f32[8,128], index: 3, kind: output, shape index: {1}]
  %4 = xla_tuple %s2, %s3
  %s5 = sld [smem:[#allocation0]]
  $region30: #{focal_loss.1} parent=0
    _
  %s7 = ssub.s32 1, %s5
  %s8 = scalar_select 0, %s7, %s5
  // Predicated region
  $region2: #{focal_loss.1} parent=0 // pred_check
    _
  $region3: #{focal_loss.1} parent=0 // pred_check_branch
    %10 = sbr.rel (0) target = $region5
  $region4: #{focal_loss.1} parent=0 // pred_region
    _
  $region5: #{focal_loss.1} parent=0 // pred_fallthru
    _
  // Predicated region
  $region6: #{focal_loss.1} parent=0 // pred_check
    _
  $region7: #{focal_loss.1} parent=0 // pred_check_branch
    %12 = sbr.rel (0) target = $region9
  $region8: #{focal_loss.1} parent=0 // pred_region
    _
  $region9: #{focal_loss.1} parent=0 // pred_fallthru
    _
  %p13 = scmp.eq.s32.totalorder 0, 0
  // Predicated region
  $region10: #{focal_loss.1} parent=0 // pred_check
    %p14 = pneg %p13
  $region11: #{focal_loss.1} parent=0 // pred_check_branch
    %16 = sbr.rel (%p14) target = $region13
  $region12: #{focal_loss.1} parent=0 // pred_region
    %17 = vst [vmem:[%s2] sm:$0xff] 0.0
    %18 = vst [vmem:[%s3] sm:$0xff] 0.0
  $region13: #{focal_loss.1} parent=0 // pred_fallthru
    _
  %v19 = vld [vmem:[%s0] sm:$0xff]
  %v20 = vld [vmem:[%s0 + $0x8] sm:$0xff]
  %v21 = vld [vmem:[%s1] sm:$0xff]
  %v22 = vld [vmem:[%s1 + $0x8] sm:$0xff]
  %vm23 = vcmp.eq.f32.partialorder %v21, 1.0
  %vm24 = vcmp.eq.f32.partialorder %v22, 1.0
  %v25 = vsub.f32 1.0, %v19
  %v26 = vsub.f32 1.0, %v20
  %v27 = vsub.f32 1.0, %v21
  %v28 = vsub.f32 1.0, %v22
  %v29 = vmax.f32 %v27, 0.0
  %v30 = vmax.f32 %v28, 0.0
  %v31 = vmul.f32 %v29, %v29
  %v32 = vmul.f32 %v30, %v30
  %v33 = vmul.f32 %v31, %v31
  %v34 = vmul.f32 %v32, %v32
  %v35 = vsel %vm23, %v19, %v25
  %v36 = vsel %vm24, %v20, %v26
  %v37 = vmul.f32 %v25, %v25
  %v38 = vmul.f32 %v26, %v26
  %v39 = vmul.f32 %v19, %v19
  %v40 = vmul.f32 %v20, %v20
  %v41 = vmul.f32 %v39, %v33
  %v42 = vmul.f32 %v40, %v34
  %v43 = vsel %vm23, %v37, %v41
  %v44 = vsel %vm24, %v38, %v42
  %v45 = vsel %vm23, 1, 0
  %v46 = vsel %vm24, 1, 0
  %v47 = vcvt.s32.f32 %v45
  %v48 = vcvt.s32.f32 %v46
  %v49 = vlog2.pop %v35
  %v50 = vmul.f32 %v49, 0.6931472
  %v51 = vlog2.pop %v36
  %v52 = vmul.f32 %v51, 0.6931472
  %v53 = vmul.f32 %v50, %v43
  %v54 = vmul.f32 %v52, %v44
  %v55 = vld [vmem:[%s2] sm:$0xff]
  %v56 = vadd.f32 %v53, %v54
  %v57 = vadd.f32 %v55, %v56
  %58 = vst [vmem:[%s2] sm:$0xff] %v57
  %v59 = vld [vmem:[%s3] sm:$0xff]
  %v60 = vadd.f32 %v47, %v48
  %v61 = vadd.f32 %v59, %v60
  %62 = vst [vmem:[%s3] sm:$0xff] %v61
  // Predicated region
  $region14: #{focal_loss.1} parent=0 // pred_check
    _
  $region15: #{focal_loss.1} parent=0 // pred_check_branch
    %64 = sbr.rel (0) target = $region17
  $region16: #{focal_loss.1} parent=0 // pred_region
    _
  $region17: #{focal_loss.1} parent=0 // pred_fallthru
    _
  // Predicated region
  $region18: #{focal_loss.1} parent=0 // pred_check
    _
  $region19: #{focal_loss.1} parent=0 // pred_check_branch
    %66 = sbr.rel (0) target = $region21
  $region20: #{focal_loss.1} parent=0 // pred_region
    _
  $region21: #{focal_loss.1} parent=0 // pred_fallthru
    _
  // Predicated region
  $region22: #{focal_loss.1} parent=0 // pred_check
    _
  $region23: #{focal_loss.1} parent=0 // pred_check_branch
    %68 = sbr.rel (0) target = $region25
  $region24: #{focal_loss.1} parent=0 // pred_region
    _
  $region25: #{focal_loss.1} parent=0 // pred_fallthru
    _
  // Predicated region
  $region26: #{focal_loss.1} parent=0 // pred_check
    _
  $region27: #{focal_loss.1} parent=0 // pred_check_branch
    %70 = sbr.rel (0) target = $region29
  $region28: #{focal_loss.1} parent=0 // pred_region
    _
  $region29: #{focal_loss.1} parent=0 // pred_fallthru
    _

</llo_original>
